<compile_context>
chip_gen: v6e
topology: v6e:2x2x1
jax: 0.10.0
libtpu: 0.0.40
codegen_flags: <defaults>
</compile_context>

<pallas_src>
import string

import jax
import jax.numpy as jnp
from jax import lax
from jax.experimental import pallas as pl
from jax.experimental.pallas import tpu as pltpu

ALL_LETTERS = string.ascii_letters + " .,;'"
N_LETTERS = len(ALL_LETTERS)          # 57
N_HIDDEN = 128
N_CATEGORIES = 18                     # classic tutorial value for `all_categories`
PAD_C = 128                           # category dim padded to one full lane tile
NEG_BIG = -1.0e30                     # "minus infinity" for padded category lanes


def letter_to_index(letter):
    return ALL_LETTERS.find(letter)   # -1 for unknown characters


# ---------------------------------------------------------------------------
# Pallas kernel: the whole recurrence in one grid step, hidden carried in vregs
# ---------------------------------------------------------------------------
def _rnn_seq_kernel(len_ref,                       # SMEM (1,) int32 (prefetched true length)
                    whh_ref,                       # (128, 128)  hidden->hidden
                    who_ref,                       # (128, 128)  hidden->categories (zero-padded)
                    xh_ref,                        # (L_pad, 128) letter rows for i2h (+bias)
                    xo_ref,                        # (L_pad, 128) letter rows for i2o (+bias, -1e30 pad)
                    out_ref,                       # (1, 128) padded log-probs
                    hfin_ref):                     # (1, 128) final hidden
    true_len = len_ref[0]
    whh = whh_ref[...]                             # VMEM-resident for the whole loop

    def step(t, h):
        # hidden_{t+1} = i2h(cat(x_t, h_t)) = wxh[x_t] (bias folded) + h_t @ Whh
        x_h = xh_ref[pl.ds(t, 1), :]               # (1, 128)
        return x_h + jnp.dot(h, whh, preferred_element_type=jnp.float32)

    # Run steps 0 .. L-2; h_prev is then h_{L-1}, the hidden fed to the LAST step.
    h_prev = lax.fori_loop(0, true_len - 1, step,
                           jnp.zeros((1, N_HIDDEN), jnp.float32))

    last = true_len - 1

    # Final step: output = log_softmax(i2o(cat(x_{L-1}, h_{L-1})))
    x_o = xo_ref[pl.ds(last, 1), :]                # (1, 128), padded lanes = -1e30
    logits = x_o + jnp.dot(h_prev, who_ref[...],
                           preferred_element_type=jnp.float32)
    m = jnp.max(logits, axis=1, keepdims=True)
    lse = jnp.log(jnp.sum(jnp.exp(logits - m), axis=1, keepdims=True)) + m
    out_ref[...] = (logits - lse).astype(out_ref.dtype)

    # Final hidden: h_L = i2h(cat(x_{L-1}, h_{L-1}))
    x_h = xh_ref[pl.ds(last, 1), :]
    hfin_ref[...] = (x_h + jnp.dot(h_prev, whh,
                                   preferred_element_type=jnp.float32)
                     ).astype(hfin_ref.dtype)


@jax.jit
def _rnn_forward_padded(idx_pad, true_len, whh, who_pad, wxh_b, wxo_b,
                        b_i2h, b_i2o_pad):
    """idx_pad: (L_pad,) int32 (bucketed), true_len: scalar int32."""
    l_pad = idx_pad.shape[0]

    # Pre-gather the per-letter rows (bias folded).  Unknown letters (-1) get
    # exactly the bias row, matching one_hot(-1) == zero row in the reference.
    safe = jnp.clip(idx_pad, 0, N_LETTERS - 1)
    known = (idx_pad >= 0)[:, None]
    xh_rows = jnp.where(known, wxh_b[safe], b_i2h)          # (L_pad, 128)
    xo_rows = jnp.where(known, wxo_b[safe], b_i2o_pad)      # (L_pad, 128)

    len_arr = jnp.asarray(true_len, jnp.int32).reshape((1,))

    grid_spec = pltpu.PrefetchScalarGridSpec(
        num_scalar_prefetch=1,
        grid=(1,),
        in_specs=[
            pl.BlockSpec((N_HIDDEN, N_HIDDEN), lambda i, l: (0, 0)),
            pl.BlockSpec((N_HIDDEN, PAD_C), lambda i, l: (0, 0)),
            pl.BlockSpec((l_pad, N_HIDDEN), lambda i, l: (0, 0)),
            pl.BlockSpec((l_pad, PAD_C), lambda i, l: (0, 0)),
        ],
        out_specs=(
            pl.BlockSpec((1, PAD_C), lambda i, l: (0, 0)),
            pl.BlockSpec((1, N_HIDDEN), lambda i, l: (0, 0)),
        ),
    )

    out_pad, h_final = pl.pallas_call(
        _rnn_seq_kernel,
        out_shape=(
            jax.ShapeDtypeStruct((1, PAD_C), jnp.float32),
            jax.ShapeDtypeStruct((1, N_HIDDEN), jnp.float32),
        ),
        grid_spec=grid_spec,
        compiler_params=pltpu.CompilerParams(
            dimension_semantics=("arbitrary",)),   # single sequential step
    )(len_arr, whh, who_pad, xh_rows, xo_rows)
    return out_pad, h_final


def rnn_forward(line, prep):
    """Run the RNN over a name.  Returns (log_probs (1, C), final hidden (1, H))."""
    if len(line) == 0:
        raise ValueError("rnn_forward: empty input line")
    idx = [letter_to_index(c) for c in line]
    l_pad = max(8, ((len(idx) + 7) // 8) * 8)      # bucket -> few recompiles
    idx_pad = jnp.array(idx + [0] * (l_pad - len(idx)), dtype=jnp.int32)
    out_pad, h_final = _rnn_forward_padded(
        idx_pad, jnp.int32(len(idx)),
        prep["whh"], prep["who_pad"], prep["wxh_b"], prep["wxo_b"],
        prep["b_i2h"], prep["b_i2o_pad"])
    return out_pad[:, :N_CATEGORIES], h_final


# ---------------------------------------------------------------------------
# Parameters (PyTorch-Linear-style uniform init) + kernel-layout preparation
# ---------------------------------------------------------------------------
def init_params(key):
    in_features = N_LETTERS + N_HIDDEN            # 185
    bound = 1.0 / (in_features ** 0.5)
    k = jax.random.split(key, 4)
    w_i2h = jax.random.uniform(k[0], (in_features, N_HIDDEN),
                               minval=-bound, maxval=bound, dtype=jnp.float32)
    b_i2h = jax.random.uniform(k[1], (1, N_HIDDEN),
                               minval=-bound, maxval=bound, dtype=jnp.float32)
    w_i2o = jax.random.uniform(k[2], (in_features, N_CATEGORIES),
                               minval=-bound, maxval=bound, dtype=jnp.float32)
    b_i2o = jax.random.uniform(k[3], (1, N_CATEGORIES),
                               minval=-bound, maxval=bound, dtype=jnp.float32)
    return w_i2h, b_i2h, w_i2o, b_i2o


def prepare_params(w_i2h, b_i2h, w_i2o, b_i2o):
    """cat(x,h)@W == x@W[:57] + h@W[57:]; x is one-hot -> x@W[:57] is a row read.

    Biases are folded into the letter-row tables (exact: one row per step).
    The category dimension is padded to 128 lanes; padded columns carry
    -1e30 in the bias tables (so log-softmax ignores them) and 0 in `who`.
    """
    wxh_b = w_i2h[:N_LETTERS] + b_i2h                          # (57, 128)
    whh = w_i2h[N_LETTERS:]                                    # (128, 128)
    wxo = w_i2o[:N_LETTERS] + b_i2o                            # (57, 18)
    who = w_i2o[N_LETTERS:]                                    # (128, 18)

    pad_c = PAD_C - N_CATEGORIES
    wxo_b = jnp.concatenate(
        [wxo, jnp.full((N_LETTERS, pad_c), NEG_BIG, jnp.float32)], axis=1)
    b_i2o_pad = jnp.concatenate(
        [b_i2o, jnp.full((1, pad_c), NEG_BIG, jnp.float32)], axis=1)
    who_pad = jnp.pad(who, ((0, 0), (0, pad_c)))               # (128, 128)

    return dict(whh=whh, who_pad=who_pad, wxh_b=wxh_b, wxo_b=wxo_b,
                b_i2h=b_i2h, b_i2o_pad=b_i2o_pad)


# ---------------------------------------------------------------------------
# Pure-JAX reference (mirrors the PyTorch forward, step by step)
# ---------------------------------------------------------------------------
def rnn_reference(letter_idx, w_i2h, b_i2h, w_i2o, b_i2o):
    h = jnp.zeros((1, N_HIDDEN), dtype=jnp.float32)
    out = None
    for t in range(letter_idx.shape[0]):
        x = jax.nn.one_hot(letter_idx[t], N_LETTERS, dtype=jnp.float32)[None, :]
        combined = jnp.concatenate([x, h], axis=1)
        new_h = combined @ w_i2h + b_i2h
        logits = combined @ w_i2o + b_i2o
        out = jax.nn.log_softmax(logits, axis=1)
        h = new_h
    return out, h


if __name__ == "__main__":
    key = jax.random.PRNGKey(0)
    params = init_params(key)
    prep = prepare_params(*params)

    name = "Albert"
    output, hidden = rnn_forward(name, prep)
    output = jax.block_until_ready(output)
    hidden = jax.block_until_ready(hidden)

    # Correctness checks against a pure-JAX reference of the PyTorch forward.
    letter_idx = jnp.array([letter_to_index(c) for c in name], dtype=jnp.int32)
    ref_out, ref_h = rnn_reference(letter_idx, *params)
    assert output.shape == (1, N_CATEGORIES)
    assert hidden.shape == (1, N_HIDDEN)
    assert abs(float(jnp.exp(output).sum()) - 1.0) < 1e-4
    assert jnp.allclose(output, ref_out, atol=1e-4, rtol=1e-4)
    assert jnp.allclose(hidden, ref_h, atol=1e-4, rtol=1e-4)

    # Same bucket, different length -> no recompile, still correct.
    output2, hidden2 = rnn_forward("Ali", prep)
    ref_out2, ref_h2 = rnn_reference(
        jnp.array([letter_to_index(c) for c in "Ali"], dtype=jnp.int32), *params)
    assert jnp.allclose(output2, ref_out2, atol=1e-4, rtol=1e-4)
    assert jnp.allclose(hidden2, ref_h2, atol=1e-4, rtol=1e-4)

    print("KERNEL_OK")
</pallas_src>

<mosaic_0001>
module attributes {stable_mosaic.version = 11 : i64} {
  func.func @_rnn_seq_kernel(%arg0: i32, %arg1: memref<1xi32, #tpu.memory_space<smem>>, %arg2: memref<128x128xf32, #tpu.memory_space<vmem>>, %arg3: memref<128x128xf32, #tpu.memory_space<vmem>>, %arg4: memref<8x128xf32, #tpu.memory_space<vmem>>, %arg5: memref<8x128xf32, #tpu.memory_space<vmem>>, %arg6: memref<1x128xf32, #tpu.memory_space<vmem>>, %arg7: memref<1x128xf32, #tpu.memory_space<vmem>>) attributes {dimension_semantics = [#tpu.dimension_semantics<arbitrary>], iteration_bounds = array<i64: 1>, scalar_prefetch = 1 : i64, scratch_operands = 0 : i64, tpu.core_type = #tpu.core_type<tc>, window_params = [{pipeline_mode = #tpu.pipeline_mode<synchronous>, transform_indices = @transform_0, window_bounds = array<i64: 128, 128>}, {pipeline_mode = #tpu.pipeline_mode<synchronous>, transform_indices = @transform_1, window_bounds = array<i64: 128, 128>}, {pipeline_mode = #tpu.pipeline_mode<synchronous>, transform_indices = @transform_2, window_bounds = array<i64: 8, 128>}, {pipeline_mode = #tpu.pipeline_mode<synchronous>, transform_indices = @transform_3, window_bounds = array<i64: 8, 128>}, {pipeline_mode = #tpu.pipeline_mode<synchronous>, transform_indices = @transform_4, window_bounds = array<i64: 1, 128>}, {pipeline_mode = #tpu.pipeline_mode<synchronous>, transform_indices = @transform_5, window_bounds = array<i64: 1, 128>}]} {
    %c0 = arith.constant 0 : index
    %0 = memref.load %arg1[%c0] : memref<1xi32, #tpu.memory_space<smem>>
    %c0_0 = arith.constant 0 : index
    %c0_1 = arith.constant 0 : index
    %1 = vector.load %arg2[%c0_0, %c0_1] : memref<128x128xf32, #tpu.memory_space<vmem>>, vector<128x128xf32>
    %c1_i32 = arith.constant 1 : i32
    %2 = arith.subi %0, %c1_i32 : i32
    %cst = arith.constant 0.000000e+00 : f32
    %3 = vector.broadcast %cst : f32 to vector<1x128xf32>
    %c0_i32 = arith.constant 0 : i32
    %4 = arith.subi %2, %c0_i32 : i32
    %5 = arith.addi %c0_i32, %4 : i32
    %c1_i32_2 = arith.constant 1 : i32
    %6 = scf.for %arg8 = %c0_i32 to %5 step %c1_i32_2 iter_args(%arg9 = %3) -> (vector<1x128xf32>)  : i32 {
      %30 = arith.index_cast %arg8 : i32 to index
      %c0_16 = arith.constant 0 : index
      %31 = vector.load %arg4[%30, %c0_16] : memref<8x128xf32, #tpu.memory_space<vmem>>, vector<1x128xf32>
      %cst_17 = arith.constant dense<0.000000e+00> : vector<1x128xf32>
      %32 = tpu.matmul %arg9, %1, %cst_17 {dimension_numbers = #tpu.dot_dimension_numbers<[1], [0], [0], [1], [0, 0, 1, 1], [], []>} : vector<1x128xf32>, vector<128x128xf32>, vector<1x128xf32> -> vector<1x128xf32>
      %33 = arith.addf %31, %32 : vector<1x128xf32>
      scf.yield %33 : vector<1x128xf32>
    }
    %c1_i32_3 = arith.constant 1 : i32
    %7 = arith.subi %0, %c1_i32_3 : i32
    %8 = arith.index_cast %7 : i32 to index
    %c0_4 = arith.constant 0 : index
    %9 = vector.load %arg5[%8, %c0_4] : memref<8x128xf32, #tpu.memory_space<vmem>>, vector<1x128xf32>
    %c0_5 = arith.constant 0 : index
    %c0_6 = arith.constant 0 : index
    %10 = vector.load %arg3[%c0_5, %c0_6] : memref<128x128xf32, #tpu.memory_space<vmem>>, vector<128x128xf32>
    %cst_7 = arith.constant dense<0.000000e+00> : vector<1x128xf32>
    %11 = tpu.matmul %6, %10, %cst_7 {dimension_numbers = #tpu.dot_dimension_numbers<[1], [0], [0], [1], [0, 0, 1, 1], [], []>} : vector<1x128xf32>, vector<128x128xf32>, vector<1x128xf32> -> vector<1x128xf32>
    %12 = arith.addf %9, %11 : vector<1x128xf32>
    %cst_8 = arith.constant dense<0xFF800000> : vector<1xf32>
    %13 = vector.multi_reduction <maximumf>, %12, %cst_8 [1] : vector<1x128xf32> to vector<1xf32>
    %14 = vector.shape_cast %13 : vector<1xf32> to vector<1x1xf32>
    %15 = vector.broadcast %14 : vector<1x1xf32> to vector<1x128xf32>
    %16 = arith.subf %12, %15 : vector<1x128xf32>
    %17 = math.exp %16 : vector<1x128xf32>
    %cst_9 = arith.constant dense<0.000000e+00> : vector<1xf32>
    %18 = vector.multi_reduction <add>, %17, %cst_9 [1] : vector<1x128xf32> to vector<1xf32>
    %19 = vector.shape_cast %18 : vector<1xf32> to vector<1x1xf32>
    %20 = math.log %19 : vector<1x1xf32>
    %21 = arith.addf %20, %14 : vector<1x1xf32>
    %22 = vector.broadcast %21 : vector<1x1xf32> to vector<1x128xf32>
    %23 = arith.subf %12, %22 : vector<1x128xf32>
    %c0_10 = arith.constant 0 : index
    %c0_11 = arith.constant 0 : index
    %24 = vector.load %arg6[%c0_10, %c0_11] : memref<1x128xf32, #tpu.memory_space<vmem>>, vector<1x128xf32>
    tpu.vector_store %arg6[%c0_10, %c0_11], %23 {strides = array<i32>} : memref<1x128xf32, #tpu.memory_space<vmem>>, vector<1x128xf32>,
    %25 = arith.index_cast %7 : i32 to index
    %c0_12 = arith.constant 0 : index
    %26 = vector.load %arg4[%25, %c0_12] : memref<8x128xf32, #tpu.memory_space<vmem>>, vector<1x128xf32>
    %cst_13 = arith.constant dense<0.000000e+00> : vector<1x128xf32>
    %27 = tpu.matmul %6, %1, %cst_13 {dimension_numbers = #tpu.dot_dimension_numbers<[1], [0], [0], [1], [0, 0, 1, 1], [], []>} : vector<1x128xf32>, vector<128x128xf32>, vector<1x128xf32> -> vector<1x128xf32>
    %28 = arith.addf %26, %27 : vector<1x128xf32>
    %c0_14 = arith.constant 0 : index
    %c0_15 = arith.constant 0 : index
    %29 = vector.load %arg7[%c0_14, %c0_15] : memref<1x128xf32, #tpu.memory_space<vmem>>, vector<1x128xf32>
    tpu.vector_store %arg7[%c0_14, %c0_15], %28 {strides = array<i32>} : memref<1x128xf32, #tpu.memory_space<vmem>>, vector<1x128xf32>,
    return
  }
  func.func @transform_0(%arg0: i32, %arg1: memref<1xi32, #tpu.memory_space<smem>>) -> (i32, i32) {
    %c0_i32 = arith.constant 0 : i32
    %c0_i32_0 = arith.constant 0 : i32
    %c0_i32_1 = arith.constant 0 : i32
    return %c0_i32, %c0_i32_0 : i32, i32
  }
  func.func @transform_1(%arg0: i32, %arg1: memref<1xi32, #tpu.memory_space<smem>>) -> (i32, i32) {
    %c0_i32 = arith.constant 0 : i32
    %c0_i32_0 = arith.constant 0 : i32
    %c0_i32_1 = arith.constant 0 : i32
    return %c0_i32, %c0_i32_0 : i32, i32
  }
  func.func @transform_2(%arg0: i32, %arg1: memref<1xi32, #tpu.memory_space<smem>>) -> (i32, i32) {
    %c0_i32 = arith.constant 0 : i32
    %c0_i32_0 = arith.constant 0 : i32
    %c0_i32_1 = arith.constant 0 : i32
    return %c0_i32, %c0_i32_0 : i32, i32
  }
  func.func @transform_3(%arg0: i32, %arg1: memref<1xi32, #tpu.memory_space<smem>>) -> (i32, i32) {
    %c0_i32 = arith.constant 0 : i32
    %c0_i32_0 = arith.constant 0 : i32
    %c0_i32_1 = arith.constant 0 : i32
    return %c0_i32, %c0_i32_0 : i32, i32
  }
  func.func @transform_4(%arg0: i32, %arg1: memref<1xi32, #tpu.memory_space<smem>>) -> (i32, i32) {
    %c0_i32 = arith.constant 0 : i32
    %c0_i32_0 = arith.constant 0 : i32
    %c0_i32_1 = arith.constant 0 : i32
    return %c0_i32, %c0_i32_0 : i32, i32
  }
  func.func @transform_5(%arg0: i32, %arg1: memref<1xi32, #tpu.memory_space<smem>>) -> (i32, i32) {
    %c0_i32 = arith.constant 0 : i32
    %c0_i32_0 = arith.constant 0 : i32
    %c0_i32_1 = arith.constant 0 : i32
    return %c0_i32, %c0_i32_0 : i32, i32
  }
}

</mosaic_0001>

<llo_original>
// kernel: _rnn_forward_padded.1
$region0: #{_rnn_forward_padded.1}
  #allocation0 [shape = 'u32[]', space=smem, size = 0x4, offset = 0x4, fixed_abs, tag = 'smem constant byte address 0x4 - core index']
  #allocation1 [shape = 'u32[144,128]{1,0:T(1,128)}', space=vmem, size = 0x12000, scoped, tag = 'internal scratch']
  #allocation2 [shape = 's32[1]{0}', space=sflag, size = 0x4, scoped, tag = 'scoped memory for _rnn_forward_padded.1']
  #allocation3 [shape = 's32[1]{0:T(128)S(6)}', space=smem, size = 0x200, scoped, tag = 'prefetched SMEM operand 0']
  %s0 = inlined_call_operand.<no memory space> [shape: s32[1], index: 0, kind: input, shape index: {}]
  %s1 = inlined_call_operand.vmem [shape: f32[128,128], index: 1, kind: input, shape index: {}]
  %s2 = inlined_call_operand.hbm [shape: f32[128,128], index: 2, kind: input, shape index: {}]
  %s3 = inlined_call_operand.vmem [shape: f32[8,128], index: 3, kind: input, shape index: {}]
  %s4 = inlined_call_operand.vmem [shape: f32[8,128], index: 4, kind: input, shape index: {}]
  %s5 = inlined_call_operand.hbm [shape: f32[1,128], index: 5, kind: output, shape index: {0}]
  %s6 = inlined_call_operand.hbm [shape: f32[1,128], index: 6, kind: output, shape index: {1}]
  %7 = xla_tuple %s5, %s6
  %s8 = sld [smem:[#allocation0]]
  $region45: #{_rnn_forward_padded.1} parent=0
    _
  %s10 = ssub.s32 1, %s8
  %s11 = scalar_select 0, %s10, %s8
  %12 = sst [smem:[#allocation3]] %s0
  $region1: #{_rnn_forward_padded.1} parent=0
    #allocation4 [shape = 'u8[65536]{0}', space=vmem, size = 0x10000, scoped, tag = 'input window, operand 2, single buffered']
    #allocation5 [shape = 's32[1]{0}', space=sflag, size = 0x4, scoped, tag = 'scoped memory for _rnn_forward_padded.1']
    #allocation6 [shape = 's32[1]{0}', space=sflag, size = 0x4, scoped, tag = 'scoped memory for _rnn_forward_padded.1']
    #allocation7 [shape = 'u8[512]{0}', space=vmem, size = 0x400, scoped, tag = 'output window, operand 0, single buffered']
    #allocation8 [shape = 'u8[512]{0}', space=vmem, size = 0x400, scoped, tag = 'output window, operand 1, single buffered']
    #allocation9 [shape = 's32[1]{0}', space=sflag, size = 0x4, scoped, tag = 'scoped memory for _rnn_forward_padded.1']
    %13 = vsyncpa [#allocation5], 0
    %14 = vsyncpa [#allocation6], 0
    %15 = vsyncpa [#allocation9], 0
    // Predicated region
    $region2: #{_rnn_forward_padded.1} parent=1 // pred_check
      _
    $region3: #{_rnn_forward_padded.1} parent=1 // pred_check_branch
      %17 = sbr.rel (0) target = $region5
    $region4: #{_rnn_forward_padded.1} parent=1 // pred_region
      _
    $region5: #{_rnn_forward_padded.1} parent=1 // pred_fallthru
      _
    // Predicated region
    $region6: #{_rnn_forward_padded.1} parent=1 // pred_check
      _
    $region7: #{_rnn_forward_padded.1} parent=1 // pred_check_branch
      %19 = sbr.rel (0) target = $region9
    $region8: #{_rnn_forward_padded.1} parent=1 // pred_region
      %s21 = ssub.s32 2048, 2048
      %22 = vsyncadd [#allocation5], %s21
      %s23 = sshll.u32 [#allocation4], 4
      %s24 = int_to_ptr.vmem [resolvable:$true] %s23
      %29 = dma.hbm_to_vmem [thread:$0]  %s2, 2048, %s24, [#allocation5], 128, 128, 8
    $region9: #{_rnn_forward_padded.1} parent=1 // pred_fallthru
      _
    // Predicated region
    $region10: #{_rnn_forward_padded.1} parent=1 // pred_check
      _
    $region11: #{_rnn_forward_padded.1} parent=1 // pred_check_branch
      %31 = sbr.rel (0) target = $region13
    $region12: #{_rnn_forward_padded.1} parent=1 // pred_region
      _
    $region13: #{_rnn_forward_padded.1} parent=1 // pred_fallthru
      _
    // Predicated region
    $region14: #{_rnn_forward_padded.1} parent=1 // pred_check
      _
    $region15: #{_rnn_forward_padded.1} parent=1 // pred_check_branch
      %33 = sbr.rel (0) target = $region17
    $region16: #{_rnn_forward_padded.1} parent=1 // pred_region
      _
    $region17: #{_rnn_forward_padded.1} parent=1 // pred_fallthru
      _
    // Predicated region
    $region18: #{_rnn_forward_padded.1} parent=1 // pred_check
      _
    $region19: #{_rnn_forward_padded.1} parent=1 // pred_check_branch
      %35 = sbr.rel (0) target = $region21
    $region20: #{_rnn_forward_padded.1} parent=1 // pred_region
      %36 = dma.done [#allocation5], 2048
    $region21: #{_rnn_forward_padded.1} parent=1 // pred_fallthru
      _
    %s37 = sld [smem:[#allocation3]]
    %v38 = vld [vmem:[%s1] sm:$0xff]
    %v39 = vld [vmem:[%s1 + $0x8] sm:$0xff]
    %v40 = vld [vmem:[%s1 + $0x10] sm:$0xff]
    %v41 = vld [vmem:[%s1 + $0x18] sm:$0xff]
    %v42 = vld [vmem:[%s1 + $0x20] sm:$0xff]
    %v43 = vld [vmem:[%s1 + $0x28] sm:$0xff]
    %v44 = vld [vmem:[%s1 + $0x30] sm:$0xff]
    %v45 = vld [vmem:[%s1 + $0x38] sm:$0xff]
    %v46 = vld [vmem:[%s1 + $0x40] sm:$0xff]
    %v47 = vld [vmem:[%s1 + $0x48] sm:$0xff]
    %v48 = vld [vmem:[%s1 + $0x50] sm:$0xff]
    %v49 = vld [vmem:[%s1 + $0x58] sm:$0xff]
    %v50 = vld [vmem:[%s1 + $0x60] sm:$0xff]
    %v51 = vld [vmem:[%s1 + $0x68] sm:$0xff]
    %v52 = vld [vmem:[%s1 + $0x70] sm:$0xff]
    %v53 = vld [vmem:[%s1 + $0x78] sm:$0xff]
    %s54 = ssub.s32 %s37, 1
    // While loop
    $region22: #{_rnn_forward_padded.1} parent=1 // loop_pre_header
      _
    $region23: #{_rnn_forward_padded.1} parent=1 // loop_header
      %s56 = sphi 0, %s58
      %p57 = scmp.ge.s32.totalorder %s56, %s54
      %v61 = vphi 0.0, %v134
    $region24: #{_rnn_forward_padded.1} parent=1 // loop_header_branch
      %60 = sbr.rel (%p57) target = $region28
    $region25: #{_rnn_forward_padded.1} parent=1 // loop_body
      %s62 = scalar_lea.vmem %s3, %s56
      %v63 = vld [vmem:[%s62] sm:$0x1]
      %64 = vmatprep.subr.mxu0 0.0
      %65 = vmatpush1.msra.mxu0 %v53
      %66 = vmatprep.subr.mxu0 0.0
      %67 = vmatpush1.msra.mxu0 %v52
      %68 = vmatprep.subr.mxu0 0.0
      %69 = vmatpush1.msra.mxu0 %v51
      %70 = vmatprep.subr.mxu0 0.0
      %71 = vmatpush1.msra.mxu0 %v50
      %72 = vmatprep.subr.mxu0 0.0
      %73 = vmatpush1.msra.mxu0 %v49
      %74 = vmatprep.subr.mxu0 0.0
      %75 = vmatpush1.msra.mxu0 %v48
      %76 = vmatprep.subr.mxu0 0.0
      %77 = vmatpush1.msra.mxu0 %v47
      %78 = vmatprep.subr.mxu0 0.0
      %79 = vmatpush1.msra.mxu0 %v46
      %80 = vmatprep.subr.mxu0 0.0
      %81 = vmatpush1.msra.mxu0 %v45
      %82 = vmatprep.subr.mxu0 0.0
      %83 = vmatpush1.msra.mxu0 %v44
      %84 = vmatprep.subr.mxu0 0.0
      %85 = vmatpush1.msra.mxu0 %v43
      %86 = vmatprep.subr.mxu0 0.0
      %87 = vmatpush1.msra.mxu0 %v42
      %88 = vmatprep.subr.mxu0 0.0
      %89 = vmatpush1.msra.mxu0 %v41
      %90 = vmatprep.subr.mxu0 0.0
      %91 = vmatpush1.msra.mxu0 %v40
      %92 = vmatprep.subr.mxu0 0.0
      %93 = vmatpush1.msra.mxu0 %v39
      %94 = vmatprep.subr.mxu0 0.0
      %95 = vmatpush1.msra.mxu0 %v38
      %96 = vmatprep.subr.mxu0 0.0
      %97 = vmatpush2.msra.mxu0 0.0
      %98 = vmatprep.subr.mxu0 0.0
      %99 = vmatpush2.msra.mxu0 0.0
      %100 = vmatprep.subr.mxu0 0.0
      %101 = vmatpush2.msra.mxu0 0.0
      %102 = vmatprep.subr.mxu0 0.0
      %103 = vmatpush2.msra.mxu0 0.0
      %104 = vmatprep.subr.mxu0 0.0
      %105 = vmatpush2.msra.mxu0 0.0
      %106 = vmatprep.subr.mxu0 0.0
      %107 = vmatpush2.msra.mxu0 0.0
      %108 = vmatprep.subr.mxu0 0.0
      %109 = vmatpush2.msra.mxu0 0.0
      %110 = vmatprep.subr.mxu0 0.0
      %111 = vmatpush2.msra.mxu0 0.0
      %112 = vmatprep.subr.mxu0 0.0
      %113 = vmatpush2.msra.mxu0 0.0
      %114 = vmatprep.subr.mxu0 0.0
      %115 = vmatpush2.msra.mxu0 0.0
      %116 = vmatprep.subr.mxu0 0.0
      %117 = vmatpush2.msra.mxu0 0.0
      %118 = vmatprep.subr.mxu0 0.0
      %119 = vmatpush2.msra.mxu0 0.0
      %120 = vmatprep.subr.mxu0 0.0
      %121 = vmatpush2.msra.mxu0 0.0
      %122 = vmatprep.subr.mxu0 0.0
      %123 = vmatpush2.msra.mxu0 0.0
      %124 = vmatprep.subr.mxu0 0.0
      %125 = vmatpush2.msra.mxu0 0.0
      %126 = vmatprep.subr.mxu0 0.0
      %127 = vmatpush2.msra.mxu0 0.0
      %128 = vmatprep.mubr.f32.mxu0 0.0
      %129 = vmatmul.mubr.f32.gmra.mxu0 %v61
      %v130 = vpop.f32.mrf.mxu0
      %v131 = vadd.f32 0.0, %v130
      %v132 = vpop.f32.mrf.mxu0
      %133 = vdwg.mxu0
      %v134 = vadd.f32 %v63, %v131
    $region26: #{_rnn_forward_padded.1} parent=1 // loop_footer
      %s58 = sadd.s32 %s56, 1
    $region27: #{_rnn_forward_padded.1} parent=1 // loop_footer_branch
      %55 = sbr.rel target = $region23
    $region28: #{_rnn_forward_padded.1} parent=1 // loop_exit
      _
    %s135 = scalar_lea.vmem %s4, %s54
    %v136 = vld [vmem:[%s135] sm:$0x1]
    %v137 = vld [vmem:[#allocation4] sm:$0xff]
    %v138 = vld [vmem:[#allocation4 + $0x8] sm:$0xff]
    %v139 = vld [vmem:[#allocation4 + $0x10] sm:$0xff]
    %v140 = vld [vmem:[#allocation4 + $0x18] sm:$0xff]
    %v141 = vld [vmem:[#allocation4 + $0x20] sm:$0xff]
    %v142 = vld [vmem:[#allocation4 + $0x28] sm:$0xff]
    %v143 = vld [vmem:[#allocation4 + $0x30] sm:$0xff]
    %v144 = vld [vmem:[#allocation4 + $0x38] sm:$0xff]
    %v145 = vld [vmem:[#allocation4 + $0x40] sm:$0xff]
    %v146 = vld [vmem:[#allocation4 + $0x48] sm:$0xff]
    %v147 = vld [vmem:[#allocation4 + $0x50] sm:$0xff]
    %v148 = vld [vmem:[#allocation4 + $0x58] sm:$0xff]
    %v149 = vld [vmem:[#allocation4 + $0x60] sm:$0xff]
    %v150 = vld [vmem:[#allocation4 + $0x68] sm:$0xff]
    %v151 = vld [vmem:[#allocation4 + $0x70] sm:$0xff]
    %v152 = vld [vmem:[#allocation4 + $0x78] sm:$0xff]
    %153 = vmatprep.subr.mxu0 0.0
    %154 = vmatpush1.msra.mxu0 %v152
    %155 = vmatprep.subr.mxu0 0.0
    %156 = vmatpush1.msra.mxu0 %v151
    %157 = vmatprep.subr.mxu0 0.0
    %158 = vmatpush1.msra.mxu0 %v150
    %159 = vmatprep.subr.mxu0 0.0
    %160 = vmatpush1.msra.mxu0 %v149
    %161 = vmatprep.subr.mxu0 0.0
    %162 = vmatpush1.msra.mxu0 %v148
    %163 = vmatprep.subr.mxu0 0.0
    %164 = vmatpush1.msra.mxu0 %v147
    %165 = vmatprep.subr.mxu0 0.0
    %166 = vmatpush1.msra.mxu0 %v146
    %167 = vmatprep.subr.mxu0 0.0
    %168 = vmatpush1.msra.mxu0 %v145
    %169 = vmatprep.subr.mxu0 0.0
    %170 = vmatpush1.msra.mxu0 %v144
    %171 = vmatprep.subr.mxu0 0.0
    %172 = vmatpush1.msra.mxu0 %v143
    %173 = vmatprep.subr.mxu0 0.0
    %174 = vmatpush1.msra.mxu0 %v142
    %175 = vmatprep.subr.mxu0 0.0
    %176 = vmatpush1.msra.mxu0 %v141
    %177 = vmatprep.subr.mxu0 0.0
    %178 = vmatpush1.msra.mxu0 %v140
    %179 = vmatprep.subr.mxu0 0.0
    %180 = vmatpush1.msra.mxu0 %v139
    %181 = vmatprep.subr.mxu0 0.0
    %182 = vmatpush1.msra.mxu0 %v138
    %183 = vmatprep.subr.mxu0 0.0
    %184 = vmatpush1.msra.mxu0 %v137
    %185 = vmatprep.subr.mxu0 0.0
    %186 = vmatpush2.msra.mxu0 0.0
    %187 = vmatprep.subr.mxu0 0.0
    %188 = vmatpush2.msra.mxu0 0.0
    %189 = vmatprep.subr.mxu0 0.0
    %190 = vmatpush2.msra.mxu0 0.0
    %191 = vmatprep.subr.mxu0 0.0
    %192 = vmatpush2.msra.mxu0 0.0
    %193 = vmatprep.subr.mxu0 0.0
    %194 = vmatpush2.msra.mxu0 0.0
    %195 = vmatprep.subr.mxu0 0.0
    %196 = vmatpush2.msra.mxu0 0.0
    %197 = vmatprep.subr.mxu0 0.0
    %198 = vmatpush2.msra.mxu0 0.0
    %199 = vmatprep.subr.mxu0 0.0
    %200 = vmatpush2.msra.mxu0 0.0
    %201 = vmatprep.subr.mxu0 0.0
    %202 = vmatpush2.msra.mxu0 0.0
    %203 = vmatprep.subr.mxu0 0.0
    %204 = vmatpush2.msra.mxu0 0.0
    %205 = vmatprep.subr.mxu0 0.0
    %206 = vmatpush2.msra.mxu0 0.0
    %207 = vmatprep.subr.mxu0 0.0
    %208 = vmatpush2.msra.mxu0 0.0
    %209 = vmatprep.subr.mxu0 0.0
    %210 = vmatpush2.msra.mxu0 0.0
    %211 = vmatprep.subr.mxu0 0.0
    %212 = vmatpush2.msra.mxu0 0.0
    %213 = vmatprep.subr.mxu0 0.0
    %214 = vmatpush2.msra.mxu0 0.0
    %215 = vmatprep.subr.mxu0 0.0
    %216 = vmatpush2.msra.mxu0 0.0
    %217 = vmatprep.mubr.f32.mxu0 0.0
    %218 = vmatmul.mubr.f32.gmra.mxu0 %v61
    %v219 = vpop.f32.mrf.mxu0
    %v220 = vadd.f32 0.0, %v219
    %v221 = vpop.f32.mrf.mxu0
    %222 = vdwg.mxu0
    %v223 = vadd.f32 %v136, %v220
    %vm224 = vcmask 1040384
    %v225 = vsel %vm224, %v223, -inf
    %226 = vmax.xlane.f32.xlu0 %v225
    %v227 = vpop.xlane.xlu0 %226
    %v228 = vsub.f32 %v223, %v227
    %v229 = vmul.f32 %v228, 1.442695
    %v230 = vpow.pop %v229
    %v231 = vsel %vm224, %v230, 0.0
    %232 = vadd.xlane.f32.xlu0 %v231
    %v233 = vpop.xlane.xlu0 %232
    %v234 = vlog2.pop %v233
    %v235 = vmul.f32 %v234, 0.6931472
    %v236 = vadd.f32 %v235, %v227
    %v237 = vsub.f32 %v223, %v236
    %238 = vst [vmem:[#allocation7] sm:$0x1] %v237
    %s239 = scalar_lea.vmem %s3, %s54
    %v240 = vld [vmem:[%s239] sm:$0x1]
    %241 = vmatprep.subr.mxu0 0.0
    %242 = vmatpush1.msra.mxu0 %v53
    %243 = vmatprep.subr.mxu0 0.0
    %244 = vmatpush1.msra.mxu0 %v52
    %245 = vmatprep.subr.mxu0 0.0
    %246 = vmatpush1.msra.mxu0 %v51
    %247 = vmatprep.subr.mxu0 0.0
    %248 = vmatpush1.msra.mxu0 %v50
    %249 = vmatprep.subr.mxu0 0.0
    %250 = vmatpush1.msra.mxu0 %v49
    %251 = vmatprep.subr.mxu0 0.0
    %252 = vmatpush1.msra.mxu0 %v48
    %253 = vmatprep.subr.mxu0 0.0
    %254 = vmatpush1.msra.mxu0 %v47
    %255 = vmatprep.subr.mxu0 0.0
    %256 = vmatpush1.msra.mxu0 %v46
    %257 = vmatprep.subr.mxu0 0.0
    %258 = vmatpush1.msra.mxu0 %v45
    %259 = vmatprep.subr.mxu0 0.0
    %260 = vmatpush1.msra.mxu0 %v44
    %261 = vmatprep.subr.mxu0 0.0
    %262 = vmatpush1.msra.mxu0 %v43
    %263 = vmatprep.subr.mxu0 0.0
    %264 = vmatpush1.msra.mxu0 %v42
    %265 = vmatprep.subr.mxu0 0.0
    %266 = vmatpush1.msra.mxu0 %v41
    %267 = vmatprep.subr.mxu0 0.0
    %268 = vmatpush1.msra.mxu0 %v40
    %269 = vmatprep.subr.mxu0 0.0
    %270 = vmatpush1.msra.mxu0 %v39
    %271 = vmatprep.subr.mxu0 0.0
    %272 = vmatpush1.msra.mxu0 %v38
    %273 = vmatprep.subr.mxu0 0.0
    %274 = vmatpush2.msra.mxu0 0.0
    %275 = vmatprep.subr.mxu0 0.0
    %276 = vmatpush2.msra.mxu0 0.0
    %277 = vmatprep.subr.mxu0 0.0
    %278 = vmatpush2.msra.mxu0 0.0
    %279 = vmatprep.subr.mxu0 0.0
    %280 = vmatpush2.msra.mxu0 0.0
    %281 = vmatprep.subr.mxu0 0.0
    %282 = vmatpush2.msra.mxu0 0.0
    %283 = vmatprep.subr.mxu0 0.0
    %284 = vmatpush2.msra.mxu0 0.0
    %285 = vmatprep.subr.mxu0 0.0
    %286 = vmatpush2.msra.mxu0 0.0
    %287 = vmatprep.subr.mxu0 0.0
    %288 = vmatpush2.msra.mxu0 0.0
    %289 = vmatprep.subr.mxu0 0.0
    %290 = vmatpush2.msra.mxu0 0.0
    %291 = vmatprep.subr.mxu0 0.0
    %292 = vmatpush2.msra.mxu0 0.0
    %293 = vmatprep.subr.mxu0 0.0
    %294 = vmatpush2.msra.mxu0 0.0
    %295 = vmatprep.subr.mxu0 0.0
    %296 = vmatpush2.msra.mxu0 0.0
    %297 = vmatprep.subr.mxu0 0.0
    %298 = vmatpush2.msra.mxu0 0.0
    %299 = vmatprep.subr.mxu0 0.0
    %300 = vmatpush2.msra.mxu0 0.0
    %301 = vmatprep.subr.mxu0 0.0
    %302 = vmatpush2.msra.mxu0 0.0
    %303 = vmatprep.subr.mxu0 0.0
    %304 = vmatpush2.msra.mxu0 0.0
    %305 = vmatprep.mubr.f32.mxu0 0.0
    %306 = vmatmul.mubr.f32.gmra.mxu0 %v61
    %v307 = vpop.f32.mrf.mxu0
    %v308 = vadd.f32 0.0, %v307
    %v309 = vpop.f32.mrf.mxu0
    %310 = vdwg.mxu0
    %v311 = vadd.f32 %v240, %v308
    %312 = vst [vmem:[#allocation8] sm:$0x1] %v311
    // Predicated region
    $region29: #{_rnn_forward_padded.1} parent=1 // pred_check
      _
    $region30: #{_rnn_forward_padded.1} parent=1 // pred_check_branch
      %314 = sbr.rel (0) target = $region32
    $region31: #{_rnn_forward_padded.1} parent=1 // pred_region
      %s316 = ssub.s32 16, 16
      %317 = vsyncadd [#allocation6], %s316
      %s319 = sshll.u32 [#allocation7], 4
      %s320 = int_to_ptr.vmem [resolvable:$true] %s319
      %322 = dma.vmem_to_hbm [thread:$0]  %s320, 16, %s5, [#allocation6]
    $region32: #{_rnn_forward_padded.1} parent=1 // pred_fallthru
      _
    // Predicated region
    $region33: #{_rnn_forward_padded.1} parent=1 // pred_check
      _
    $region34: #{_rnn_forward_padded.1} parent=1 // pred_check_branch
      %324 = sbr.rel (0) target = $region36
    $region35: #{_rnn_forward_padded.1} parent=1 // pred_region
      %s326 = ssub.s32 16, 16
      %327 = vsyncadd [#allocation9], %s326
      %s329 = sshll.u32 [#allocation8], 4
      %s330 = int_to_ptr.vmem [resolvable:$true] %s329
      %332 = dma.vmem_to_hbm [thread:$0]  %s330, 16, %s6, [#allocation9]
    $region36: #{_rnn_forward_padded.1} parent=1 // pred_fallthru
      _
    // Predicated region
    $region37: #{_rnn_forward_padded.1} parent=1 // pred_check
      _
    $region38: #{_rnn_forward_padded.1} parent=1 // pred_check_branch
      %334 = sbr.rel (0) target = $region40
    $region39: #{_rnn_forward_padded.1} parent=1 // pred_region
      %335 = dma.done [#allocation6], 16
    $region40: #{_rnn_forward_padded.1} parent=1 // pred_fallthru
      _
    // Predicated region
    $region41: #{_rnn_forward_padded.1} parent=1 // pred_check
      _
    $region42: #{_rnn_forward_padded.1} parent=1 // pred_check_branch
      %337 = sbr.rel (0) target = $region44
    $region43: #{_rnn_forward_padded.1} parent=1 // pred_region
      %338 = dma.done [#allocation9], 16
    $region44: #{_rnn_forward_padded.1} parent=1 // pred_fallthru
      _
    %339 = vsyncpa [#allocation5], 1
    %340 = vsyncpa [#allocation6], 1
    %341 = vsyncpa [#allocation9], 1

</llo_original>
